<compile_context>
chip_gen: v7x
topology: tpu7x:2x2x1
jax: 0.10.0
libtpu: 0.0.40
codegen_flags: <defaults>
</compile_context>

<pallas_src>
import math
import functools

import jax
import jax.numpy as jnp
from jax.experimental import pallas as pl
from jax.experimental.pallas import tpu as pltpu


# ----------------------------------------------------------------------------- kernel

def _data_embedding_kernel(x_ref, w_ref, pe_ref, o_ref):
    # x_ref : (TL, c_tot)      VMEM   (batch dim squeezed)
    # w_ref : (c_tot, d_model) VMEM   (resident across grid: index_map constant)
    # pe_ref: (TL, d_model)    VMEM   (resident across the inner B axis)
    # o_ref : (TL, d_model)    VMEM
    acc = jnp.dot(x_ref[...], w_ref[...], preferred_element_type=jnp.float32)
    o_ref[...] = (acc + pe_ref[...].astype(jnp.float32)).astype(o_ref.dtype)


# ------------------------------------------------------------------------ PE / params

def make_positional_embedding(seq_len, d_model, dtype=jnp.float32):
    """Sinusoidal PE identical to PositionalEmbedding (first seq_len rows)."""
    position = jnp.arange(seq_len, dtype=jnp.float32)[:, None]              # (L, 1)
    div_term = jnp.exp(
        jnp.arange(0, d_model, 2, dtype=jnp.float32) * -(math.log(10000.0) / d_model)
    )                                                                        # (d_model//2,)
    pe = jnp.zeros((seq_len, d_model), dtype=jnp.float32)
    pe = pe.at[:, 0::2].set(jnp.sin(position * div_term))
    pe = pe.at[:, 1::2].set(jnp.cos(position * div_term))
    return pe.astype(dtype)


def init_params(key, c_in, d_model, dtype=jnp.float32):
    """Param init mirroring LinearEmbedding.reset_parameters (uniform +-1/sqrt(d))."""
    initrange = 1.0 / math.sqrt(d_model)
    k_val, k_time = jax.random.split(key)
    w_value = jax.random.uniform(
        k_val, (c_in, d_model), minval=-initrange, maxval=initrange, dtype=dtype)
    w_time = jax.random.uniform(
        k_time, (3, d_model), minval=-initrange, maxval=initrange, dtype=dtype)
    return w_value, w_time


# ------------------------------------------------------------------- tiling heuristics

def _vmem_limit_bytes():
    """Scoped-VMEM budget: ~3/4 of physical, capped at 64 MiB (=> 48 MiB on v7x)."""
    try:
        cap = int(pltpu.get_tpu_info().vmem_capacity_bytes)
    except Exception:
        cap = 128 << 20
    return int(min(64 << 20, (cap * 3) // 4))


def _choose_seq_tile(L, c_tot, d_model, itemsize, vmem_limit):
    """Largest TL (multiple of 8) whose live double-buffered blocks fit the budget."""
    budget = vmem_limit // 2
    const = 2 * c_tot * d_model * itemsize                      # fused weights
    per_row = itemsize * (2 * c_tot + 4 * d_model) + 4 * d_model  # x, pe, out (2x) + f32 acc
    max_rows = max(8, (budget - const) // max(per_row, 1))
    if L <= max_rows:
        return int(L)
    return int(max(8, min((max_rows // 8) * 8, 2048)))


# ----------------------------------------------------------------------------- wrapper

def _data_embedding_call(x_cat, w_cat, pe, tl, vmem_limit):
    B, L, c_tot = x_cat.shape
    d_model = w_cat.shape[1]
    n_l = pl.cdiv(L, tl)
    itemsize = jnp.dtype(x_cat.dtype).itemsize

    flops = 2 * B * L * c_tot * d_model
    bytes_accessed = itemsize * (B * L * c_tot            # x (fused)
                                 + c_tot * d_model        # weights (fused)
                                 + L * d_model            # pe
                                 + B * L * d_model)       # output
    cost = pl.CostEstimate(flops=int(flops), transcendentals=0,
                           bytes_accessed=int(bytes_accessed))

    return pl.pallas_call(
        _data_embedding_kernel,
        out_shape=jax.ShapeDtypeStruct((B, L, d_model), x_cat.dtype),
        grid_spec=pltpu.PrefetchScalarGridSpec(
            num_scalar_prefetch=0,
            # B innermost: pe / weight block indices are constant across it -> resident.
            grid=(n_l, B),
            in_specs=[
                pl.BlockSpec((pl.Squeezed(), tl, c_tot), lambda l, b: (b, l, 0)),
                pl.BlockSpec((c_tot, d_model), lambda l, b: (0, 0)),
                pl.BlockSpec((tl, d_model), lambda l, b: (l, 0)),
            ],
            out_specs=pl.BlockSpec((pl.Squeezed(), tl, d_model),
                                   lambda l, b: (b, l, 0)),
        ),
        compiler_params=pltpu.CompilerParams(
            dimension_semantics=("parallel", "parallel"),
            vmem_limit_bytes=int(vmem_limit)),
        cost_estimate=cost,
    )(x_cat, w_cat, pe)


@jax.jit
def data_embedding_forward(x, x_mark, w_value, w_time):
    """Forward of DataEmbedding (dropout in eval mode = identity).

    x:      (B, L, c_in)
    x_mark: (B, L, 3) or None
    w_value:(c_in, d_model)   (stored as [C_in, D]; equivalent to PyTorch x @ W.T)
    w_time: (3, d_model)
    returns (B, L, d_model)
    """
    B, L, c_in = x.shape
    d_model = w_value.shape[1]

    if x_mark is None:
        # Skip the time path entirely: no zeros array, no extra matmul columns.
        x_cat, w_cat = x, w_value
    else:
        # Fuse the two tiny-K matmuls into one K = c_in + 3 matmul.
        x_cat = jnp.concatenate([x, x_mark.astype(x.dtype)], axis=-1)
        w_cat = jnp.concatenate([w_value, w_time], axis=0)

    pe = make_positional_embedding(L, d_model, x.dtype)

    vmem_limit = _vmem_limit_bytes()
    tl = _choose_seq_tile(L, x_cat.shape[-1], d_model,
                          jnp.dtype(x.dtype).itemsize, vmem_limit)
    return _data_embedding_call(x_cat, w_cat, pe, tl, vmem_limit)


# --------------------------------------------------------------------------- reference

def _reference(x, x_mark, w_value, w_time):
    B, L, _ = x.shape
    d_model = w_value.shape[1]
    pe = make_positional_embedding(L, d_model, x.dtype)
    out = x @ w_value + pe[None]
    if x_mark is not None:
        out = out + x_mark @ w_time
    return out


if __name__ == "__main__":
    B, L, c_in, d_model = 2, 8, 4, 32

    key = jax.random.PRNGKey(0)
    k_x, k_xm, k_param = jax.random.split(key, 3)

    x = jax.random.normal(k_x, (B, L, c_in), dtype=jnp.float32)
    x_mark = jax.random.normal(k_xm, (B, L, 3), dtype=jnp.float32)
    w_value, w_time = init_params(k_param, c_in, d_model)

    out = jax.block_until_ready(data_embedding_forward(x, x_mark, w_value, w_time))
    ref = _reference(x, x_mark, w_value, w_time)
    assert out.shape == (B, L, d_model)
    assert jnp.allclose(out, ref, atol=1e-5, rtol=1e-5), "mismatch vs reference"

    # also exercise the x_mark is None branch (separate jit trace, no zeros DMA)
    out_none = jax.block_until_ready(data_embedding_forward(x, None, w_value, w_time))
    ref_none = _reference(x, None, w_value, w_time)
    assert jnp.allclose(out_none, ref_none, atol=1e-5, rtol=1e-5)

    print("KERNEL_OK")
</pallas_src>

<mosaic_0001>
module attributes {stable_mosaic.version = 11 : i64} {
  func.func @_data_embedding_kernel(%arg0: i32, %arg1: i32, %arg2: memref<1x8x7xf32, #tpu.memory_space<vmem>>, %arg3: memref<7x32xf32, #tpu.memory_space<vmem>>, %arg4: memref<8x32xf32, #tpu.memory_space<vmem>>, %arg5: memref<1x8x32xf32, #tpu.memory_space<vmem>>) attributes {dimension_semantics = [#tpu.dimension_semantics<parallel>, #tpu.dimension_semantics<parallel>], iteration_bounds = array<i64: 1, 2>, scalar_prefetch = 0 : i64, scratch_operands = 0 : i64, tpu.core_type = #tpu.core_type<tc>, window_params = [{transform_indices = @transform_0, window_bounds = array<i64: 1, 8, 7>}, {pipeline_mode = #tpu.pipeline_mode<synchronous>, transform_indices = @transform_1, window_bounds = array<i64: 7, 32>}, {transform_indices = @transform_2, window_bounds = array<i64: 8, 32>}, {transform_indices = @transform_3, window_bounds = array<i64: 1, 8, 32>}]} {
    %c0 = arith.constant 0 : index
    %c0_0 = arith.constant 0 : index
    %c0_1 = arith.constant 0 : index
    %0 = vector.load %arg2[%c0, %c0_0, %c0_1] : memref<1x8x7xf32, #tpu.memory_space<vmem>>, vector<1x8x7xf32>
    %1 = vector.shape_cast %0 : vector<1x8x7xf32> to vector<8x7xf32>
    %c0_2 = arith.constant 0 : index
    %c0_3 = arith.constant 0 : index
    %2 = vector.load %arg3[%c0_2, %c0_3] : memref<7x32xf32, #tpu.memory_space<vmem>>, vector<7x32xf32>
    %cst = arith.constant dense<0.000000e+00> : vector<8x32xf32>
    %3 = tpu.matmul %1, %2, %cst {dimension_numbers = #tpu.dot_dimension_numbers<[1], [0], [0], [1], [0, 0, 1, 1], [], []>} : vector<8x7xf32>, vector<7x32xf32>, vector<8x32xf32> -> vector<8x32xf32>
    %c0_4 = arith.constant 0 : index
    %c0_5 = arith.constant 0 : index
    %4 = vector.load %arg4[%c0_4, %c0_5] : memref<8x32xf32, #tpu.memory_space<vmem>>, vector<8x32xf32>
    %5 = arith.addf %3, %4 : vector<8x32xf32>
    %c0_6 = arith.constant 0 : index
    %c0_7 = arith.constant 0 : index
    %c0_8 = arith.constant 0 : index
    %6 = vector.load %arg5[%c0_6, %c0_7, %c0_8] : memref<1x8x32xf32, #tpu.memory_space<vmem>>, vector<1x8x32xf32>
    %7 = vector.shape_cast %6 : vector<1x8x32xf32> to vector<8x32xf32>
    %8 = vector.shape_cast %5 : vector<8x32xf32> to vector<1x8x32xf32>
    tpu.vector_store %arg5[%c0_6, %c0_7, %c0_8], %8 {strides = array<i32>} : memref<1x8x32xf32, #tpu.memory_space<vmem>>, vector<1x8x32xf32>,
    return
  }
  func.func @transform_0(%arg0: i32, %arg1: i32) -> (i32, i32, i32) {
    %c0_i32 = arith.constant 0 : i32
    %c0_i32_0 = arith.constant 0 : i32
    return %arg1, %arg0, %c0_i32 : i32, i32, i32
  }
  func.func @transform_1(%arg0: i32, %arg1: i32) -> (i32, i32) {
    %c0_i32 = arith.constant 0 : i32
    %c0_i32_0 = arith.constant 0 : i32
    %c0_i32_1 = arith.constant 0 : i32
    return %c0_i32, %c0_i32_0 : i32, i32
  }
  func.func @transform_2(%arg0: i32, %arg1: i32) -> (i32, i32) {
    %c0_i32 = arith.constant 0 : i32
    %c0_i32_0 = arith.constant 0 : i32
    return %arg0, %c0_i32 : i32, i32
  }
  func.func @transform_3(%arg0: i32, %arg1: i32) -> (i32, i32, i32) {
    %c0_i32 = arith.constant 0 : i32
    %c0_i32_0 = arith.constant 0 : i32
    return %arg1, %arg0, %c0_i32 : i32, i32, i32
  }
}

</mosaic_0001>

<llo_original>
// kernel: data_embedding_forward.1
$region0: #{data_embedding_forward.1}
  #allocation0 [shape = 'u32[]', space=smem, size = 0x4, offset = 0x4, fixed_abs, tag = 'smem constant byte address 0x4 - core index']
  #allocation1 [shape = 'u32[144,128]{1,0:T(1,128)}', space=vmem, size = 0x12000, scoped, tag = 'internal scratch']
  %s0 = inlined_call_operand.hbm [shape: f32[2,8,7], index: 0, kind: input, shape index: {}]
  %s1 = inlined_call_operand.hbm [shape: f32[7,32], index: 1, kind: input, shape index: {}]
  %s2 = inlined_call_operand.hbm [shape: f32[8,32], index: 2, kind: input, shape index: {}]
  %s3 = inlined_call_operand.hbm [shape: f32[2,8,32], index: 3, kind: output, shape index: {}]
  %s4 = sld [smem:[#allocation0]]
  $region57: #{data_embedding_forward.1} parent=0
    _
  %s6 = ssub.s32 1, %s4
  %s7 = scalar_select 0, %s6, %s4
  $region1: #{data_embedding_forward.1} parent=0
    #allocation2 [shape = 'u8[8192]{0}', space=vmem, size = 0x2000, scoped, tag = 'input window, operand 0']
    #allocation3 [shape = 's32[2]{0}', space=sflag, size = 0x8, scoped, tag = 'scoped memory for data_embedding_forward.1']
    #allocation4 [shape = 's32[2]{0}', space=sflag, size = 0x8, scoped, tag = 'scoped memory for data_embedding_forward.1']
    #allocation5 [shape = 'u8[4096]{0}', space=vmem, size = 0x1000, scoped, tag = 'input window, operand 1, single buffered']
    #allocation6 [shape = 's32[1]{0}', space=sflag, size = 0x4, scoped, tag = 'scoped memory for data_embedding_forward.1']
    #allocation7 [shape = 'u8[4096]{0}', space=vmem, size = 0x1000, scoped, tag = 'input window, operand 2, single buffered']
    #allocation8 [shape = 'u8[8192]{0}', space=vmem, size = 0x2000, scoped, tag = 'output window, operand 0']
    %8 = vsyncpa [#allocation3], 0
    %s9 = scalar_lea.sflag [#allocation3], 1
    %10 = vsyncpa %s9, 0
    %11 = vsyncpa [#allocation6], 0
    %12 = vsyncpa [#allocation4], 0
    %s13 = scalar_lea.sflag [#allocation4], 1
    %14 = vsyncpa %s13, 0
    loop: start=0, step=1, limit=4
    $region2: #{data_embedding_forward.1} parent=1 // loop_pre_header
      _
    $region3: #{data_embedding_forward.1} parent=1 // loop_header
      %s16 = sphi 0, %s20
      %p17 = scmp.ge.s32.totalorder %s16, 4
      %s23 = sphi 0, %s35
      %s24 = sphi 0, %s31
      %s25 = sphi 0, %s23
      %s26 = sphi 0, %s24
      %s27 = sphi 0, %s25
      %s28 = sphi 0, %s26
      %s40 = sphi 0, %s42
      %s43 = sphi 0, %s40
      %s44 = sphi 0, %s43
      %s60 = sphi 0, %s44
      %s64 = sphi 0, %s64
      %s66 = sphi 0, %s64
      %s67 = sphi 0, %s66
      %s81 = sphi 0, %s67
      %s87 = sphi 0, %s89
      %s90 = sphi 0, %s87
      %s91 = sphi 0, %s90
      %s107 = sphi 0, %s91
      %s115 = sphi 0, %s117
      %s118 = sphi 0, %s115
      %s119 = sphi 0, %s118
      %s135 = sphi 0, %s119
    $region4: #{data_embedding_forward.1} parent=1 // loop_header_branch
      %19 = sbr.rel (%p17) target = $region8
    $region5: #{data_embedding_forward.1} parent=1 // loop_body
      %s21 = ssub.s32 %s16, 1
      %s22 = ssub.s32 %s16, 2
      %s29 = sadd.s32 1, %s24
      %p30 = scmp.ge.s32.totalorder %s29, 2
      %s31 = scalar_select %p30, 0, %s29
      %s32 = sadd.s32 1, %s23
      %s33 = scalar_select %p30, %s32, %s23
      %p34 = scmp.ge.s32.totalorder %s33, 1
      %s35 = scalar_select %p34, 0, %s33
      %s36 = ssub.s32 %s24, %s31
      %s37 = ssub.s32 %s23, %s35
      %s38 = sor.u32 %s36, %s37
      %p39 = scmp.eq.s32.totalorder %s38, 0
      %s41 = sadd.s32 %s40, 1
      %s42 = scalar_select %p39, %s40, %s41
      %p45 = pneg %p39
      %p46 = scmp.eq.s32.totalorder %s16, 1
      %p47 = por %p45, %p46
      %p48 = scmp.ne.s32.totalorder %s40, %s43
      %p49 = scmp.eq.s32.totalorder %s16, 0
      %p50 = por %p48, %p49
      %p51 = scmp.ne.s32.totalorder %s40, %s43
      %p52 = scmp.eq.s32.totalorder %s21, 1
      %p53 = por %p51, %p52
      %p54 = scmp.ne.s32.totalorder %s43, %s44
      %p55 = scmp.eq.s32.totalorder %s21, 0
      %p56 = por %p54, %p55
      %p57 = scmp.ne.s32.totalorder %s43, %s44
      %p58 = scmp.eq.s32.totalorder %s22, 1
      %p59 = por %p57, %p58
      %p61 = scmp.ne.s32.totalorder %s44, %s60
      %p62 = scmp.eq.s32.totalorder %s22, 0
      %p63 = por %p61, %p62
      %s65 = sadd.s32 %s64, 1
      %p68 = scmp.eq.s32.totalorder %s16, 1
      %p69 = scmp.ne.s32.totalorder %s64, %s66
      %p70 = scmp.eq.s32.totalorder %s16, 0
      %p71 = por %p69, %p70
      %p72 = scmp.ne.s32.totalorder %s64, %s66
      %p73 = scmp.eq.s32.totalorder %s21, 1
      %p74 = por %p72, %p73
      %p75 = scmp.ne.s32.totalorder %s66, %s67
      %p76 = scmp.eq.s32.totalorder %s21, 0
      %p77 = por %p75, %p76
      %p78 = scmp.ne.s32.totalorder %s66, %s67
      %p79 = scmp.eq.s32.totalorder %s22, 1
      %p80 = por %p78, %p79
      %p82 = scmp.ne.s32.totalorder %s67, %s81
      %p83 = scmp.eq.s32.totalorder %s22, 0
      %p84 = por %p82, %p83
      %s85 = ssub.s32 %s23, %s35
      %p86 = scmp.eq.s32.totalorder %s85, 0
      %s88 = sadd.s32 %s87, 1
      %s89 = scalar_select %p86, %s87, %s88
      %p92 = pneg %p86
      %p93 = scmp.eq.s32.totalorder %s16, 1
      %p94 = por %p92, %p93
      %p95 = scmp.ne.s32.totalorder %s87, %s90
      %p96 = scmp.eq.s32.totalorder %s16, 0
      %p97 = por %p95, %p96
      %p98 = scmp.ne.s32.totalorder %s87, %s90
      %p99 = scmp.eq.s32.totalorder %s21, 1
      %p100 = por %p98, %p99
      %p101 = scmp.ne.s32.totalorder %s90, %s91
      %p102 = scmp.eq.s32.totalorder %s21, 0
      %p103 = por %p101, %p102
      %p104 = scmp.ne.s32.totalorder %s90, %s91
      %p105 = scmp.eq.s32.totalorder %s22, 1
      %p106 = por %p104, %p105
      %p108 = scmp.ne.s32.totalorder %s91, %s107
      %p109 = scmp.eq.s32.totalorder %s22, 0
      %p110 = por %p108, %p109
      %s111 = ssub.s32 %s24, %s31
      %s112 = ssub.s32 %s23, %s35
      %s113 = sor.u32 %s111, %s112
      %p114 = scmp.eq.s32.totalorder %s113, 0
      %s116 = sadd.s32 %s115, 1
      %s117 = scalar_select %p114, %s115, %s116
      %p120 = pneg %p114
      %p121 = scmp.eq.s32.totalorder %s16, 1
      %p122 = por %p120, %p121
      %p123 = scmp.ne.s32.totalorder %s115, %s118
      %p124 = scmp.eq.s32.totalorder %s16, 0
      %p125 = por %p123, %p124
      %p126 = scmp.ne.s32.totalorder %s115, %s118
      %p127 = scmp.eq.s32.totalorder %s21, 1
      %p128 = por %p126, %p127
      %p129 = scmp.ne.s32.totalorder %s118, %s119
      %p130 = scmp.eq.s32.totalorder %s21, 0
      %p131 = por %p129, %p130
      %p132 = scmp.ne.s32.totalorder %s118, %s119
      %p133 = scmp.eq.s32.totalorder %s22, 1
      %p134 = por %p132, %p133
      %p136 = scmp.ne.s32.totalorder %s119, %s135
      %p137 = scmp.eq.s32.totalorder %s22, 0
      %p138 = por %p136, %p137
      %p139 = scmp.le.s32.totalorder 1, %s16
      %p140 = scmp.lt.s32.totalorder %s16, 3
      %p141 = pnand %p139, %p140
      %p142 = pneg %p141
      // Predicated region
      $region9: #{data_embedding_forward.1} parent=5 // pred_check
        _
      $region10: #{data_embedding_forward.1} parent=5 // pred_check_branch
        %144 = sbr.rel (%p141) target = $region12
      $region11: #{data_embedding_forward.1} parent=5 // pred_region
        %s145 = ssub.s32 %s16, 1
        // Predicated region
        $region13: #{data_embedding_forward.1} parent=11 // pred_check
          %p146 = pneg %p77
        $region14: #{data_embedding_forward.1} parent=11 // pred_check_branch
          %148 = sbr.rel (%p146) target = $region16
        $region15: #{data_embedding_forward.1} parent=11 // pred_region
          %s150 = ssub.s32 128, 128
          %151 = vsyncadd [#allocation6], %s150
          %s153 = sshll.u32 [#allocation5], 4
          %s154 = int_to_ptr.vmem [resolvable:$true] %s153
          %156 = dma.hbm_to_vmem [thread:$0]  %s1, 128, %s154, [#allocation6]
        $region16: #{data_embedding_forward.1} parent=11 // pred_fallthru
          _
        // Predicated region
        $region17: #{data_embedding_forward.1} parent=11 // pred_check
          %p157 = pneg %p103
        $region18: #{data_embedding_forward.1} parent=11 // pred_check_branch
          %159 = sbr.rel (%p157) target = $region20
        $region19: #{data_embedding_forward.1} parent=11 // pred_region
          %s161 = ssub.s32 128, 128
          %162 = vsyncadd [#allocation6], %s161
          %s163 = smul.addr %s25, 128
          %s164 = scalar_lea.hbm %s2, %s163
          %s166 = sshll.u32 [#allocation7], 4
          %s167 = int_to_ptr.vmem [resolvable:$true] %s166
          %169 = dma.hbm_to_vmem [thread:$0]  %s164, 128, %s167, [#allocation6]
        $region20: #{data_embedding_forward.1} parent=11 // pred_fallthru
          _
      $region12: #{data_embedding_forward.1} parent=5 // pred_fallthru
        _
      %p170 = scmp.lt.s32.totalorder %s16, 2
      // Predicated region
      $region21: #{data_embedding_forward.1} parent=5 // pred_check
        %p171 = pneg %p170
      $region22: #{data_embedding_forward.1} parent=5 // pred_check_branch
        %173 = sbr.rel (%p171) target = $region24
      $region23: #{data_embedding_forward.1} parent=5 // pred_region
        // Predicated region
        $region25: #{data_embedding_forward.1} parent=23 // pred_check
          %p174 = pneg %p50
        $region26: #{data_embedding_forward.1} parent=23 // pred_check_branch
          %176 = sbr.rel (%p174) target = $region28
        $region27: #{data_embedding_forward.1} parent=23 // pred_region
          %s177 = sand.u32 %s40, 1
          %s178 = scalar_lea.sflag [#allocation3], %s177
          %s179 = sand.u32 %s40, 1
          %s180 = smul.addr %s179, 8
          %s181 = scalar_lea.vmem [#allocation2], %s180
          %s183 = ssub.s32 128, 128
          %184 = vsyncadd %s178, %s183
          %s185 = sadd.s32 %s23, %s24
          %s186 = smul.addr %s185, 128
          %s187 = scalar_lea.hbm %s0, %s186
          %s189 = sshll.u32 %s181, 4
          %s190 = int_to_ptr.vmem [resolvable:$true] %s189
          %192 = dma.hbm_to_vmem [thread:$0]  %s187, 128, %s190, %s178
        $region28: #{data_embedding_forward.1} parent=23 // pred_fallthru
          _
      $region24: #{data_embedding_forward.1} parent=5 // pred_fallthru
        _
      %p193 = scmp.le.s32.totalorder 1, %s16
      %p194 = scmp.lt.s32.totalorder %s16, 3
      %p195 = pnand %p193, %p194
      %p196 = pneg %p195
      // Predicated region
      $region29: #{data_embedding_forward.1} parent=5 // pred_check
        _
      $region30: #{data_embedding_forward.1} parent=5 // pred_check_branch
        %198 = sbr.rel (%p195) target = $region32
      $region31: #{data_embedding_forward.1} parent=5 // pred_region
        %s199 = ssub.s32 %s16, 1
        %s200 = sand.u32 %s43, 1
        %s201 = scalar_lea.sflag [#allocation3], %s200
        %s202 = sand.u32 %s43, 1
        %s203 = smul.addr %s202, 8
        %s204 = scalar_lea.vmem [#allocation2], %s203
        // Predicated region
        $region33: #{data_embedding_forward.1} parent=31 // pred_check
          %p205 = pneg %p56
        $region34: #{data_embedding_forward.1} parent=31 // pred_check_branch
          %207 = sbr.rel (%p205) target = $region36
        $region35: #{data_embedding_forward.1} parent=31 // pred_region
          %208 = dma.done %s201, 128
        $region36: #{data_embedding_forward.1} parent=31 // pred_fallthru
          _
        // Predicated region
        $region37: #{data_embedding_forward.1} parent=31 // pred_check
          %p209 = pneg %p77
        $region38: #{data_embedding_forward.1} parent=31 // pred_check_branch
          %211 = sbr.rel (%p209) target = $region40
        $region39: #{data_embedding_forward.1} parent=31 // pred_region
          %212 = dma.done [#allocation6], 128
        $region40: #{data_embedding_forward.1} parent=31 // pred_fallthru
          _
        // Predicated region
        $region41: #{data_embedding_forward.1} parent=31 // pred_check
          %p213 = pneg %p103
        $region42: #{data_embedding_forward.1} parent=31 // pred_check_branch
          %215 = sbr.rel (%p213) target = $region44
        $region43: #{data_embedding_forward.1} parent=31 // pred_region
          %216 = dma.done [#allocation6], 128
        $region44: #{data_embedding_forward.1} parent=31 // pred_fallthru
          _
        %s217 = sand.u32 %s43, 1
        %s218 = scalar_lea.sflag [#allocation3], %s217
        %s219 = sand.u32 %s43, 1
        %s220 = smul.addr %s219, 8
        %s221 = scalar_lea.vmem [#allocation2], %s220
        %p222 = pneg %p56
        %p223 = pneg %p53
        %p224 = pneg %p77
        %p225 = pneg %p74
        %p226 = pneg %p103
        %p227 = pneg %p100
        %p228 = pneg %p131
        %p229 = pneg %p128
        %s230 = sand.u32 %s118, 1
        %s231 = scalar_lea.sflag [#allocation4], %s230
        %s232 = sand.u32 %s118, 1
        %s233 = smul.addr %s232, 8
        %s234 = scalar_lea.vmem [#allocation8], %s233
        %v235 = vld [vmem:[%s204] sm:$0xff]
        %v236 = vld [vmem:[#allocation5] sm:$0x7f]
        %v237 = vld [vmem:[#allocation7] sm:$0xff]
        %vm238 = vcmask 56320
        %v240 = vsel %vm238, %v235, 0
        %vm242 = vcmask 1046528
        %v244 = vsel %vm242, %v236, 0
        %246 = vmatprep.subr.mxu0 0.0
        %247 = vmatpush1.msra.mxu0 %v244
        %248 = vmatprep.subr.mxu0 0.0
        %249 = vmatpush1.msra.mxu0 0.0
        %250 = vmatprep.subr.mxu0 0.0
        %251 = vmatpush1.msra.mxu0 0.0
        %252 = vmatprep.subr.mxu0 0.0
        %253 = vmatpush1.msra.mxu0 0.0
        %254 = vmatprep.subr.mxu0 0.0
        %255 = vmatpush1.msra.mxu0 0.0
        %256 = vmatprep.subr.mxu0 0.0
        %257 = vmatpush1.msra.mxu0 0.0
        %258 = vmatprep.subr.mxu0 0.0
        %259 = vmatpush1.msra.mxu0 0.0
        %260 = vmatprep.subr.mxu0 0.0
        %261 = vmatpush1.msra.mxu0 0.0
        %262 = vmatprep.subr.mxu0 0.0
        %263 = vmatpush1.msra.mxu0 0.0
        %264 = vmatprep.subr.mxu0 0.0
        %265 = vmatpush1.msra.mxu0 0.0
        %266 = vmatprep.subr.mxu0 0.0
        %267 = vmatpush1.msra.mxu0 0.0
        %268 = vmatprep.subr.mxu0 0.0
        %269 = vmatpush1.msra.mxu0 0.0
        %270 = vmatprep.subr.mxu0 0.0
        %271 = vmatpush1.msra.mxu0 0.0
        %272 = vmatprep.subr.mxu0 0.0
        %273 = vmatpush1.msra.mxu0 0.0
        %274 = vmatprep.subr.mxu0 0.0
        %275 = vmatpush1.msra.mxu0 0.0
        %276 = vmatprep.subr.mxu0 0.0
        %277 = vmatpush1.msra.mxu0 0.0
        %278 = vmatprep.subr.mxu0 0.0
        %279 = vmatpush1.msra.mxu0 0.0
        %280 = vmatprep.subr.mxu0 0.0
        %281 = vmatpush1.msra.mxu0 0.0
        %282 = vmatprep.subr.mxu0 0.0
        %283 = vmatpush1.msra.mxu0 0.0
        %284 = vmatprep.subr.mxu0 0.0
        %285 = vmatpush1.msra.mxu0 0.0
        %286 = vmatprep.subr.mxu0 0.0
        %287 = vmatpush1.msra.mxu0 0.0
        %288 = vmatprep.subr.mxu0 0.0
        %289 = vmatpush1.msra.mxu0 0.0
        %290 = vmatprep.subr.mxu0 0.0
        %291 = vmatpush1.msra.mxu0 0.0
        %292 = vmatprep.subr.mxu0 0.0
        %293 = vmatpush1.msra.mxu0 0.0
        %294 = vmatprep.subr.mxu0 0.0
        %295 = vmatpush1.msra.mxu0 0.0
        %296 = vmatprep.subr.mxu0 0.0
        %297 = vmatpush1.msra.mxu0 0.0
        %298 = vmatprep.subr.mxu0 0.0
        %299 = vmatpush1.msra.mxu0 0.0
        %300 = vmatprep.subr.mxu0 0.0
        %301 = vmatpush1.msra.mxu0 0.0
        %302 = vmatprep.subr.mxu0 0.0
        %303 = vmatpush1.msra.mxu0 0.0
        %304 = vmatprep.subr.mxu0 0.0
        %305 = vmatpush1.msra.mxu0 0.0
        %306 = vmatprep.subr.mxu0 0.0
        %307 = vmatpush1.msra.mxu0 0.0
        %308 = vmatprep.subr.mxu0 0.0
        %309 = vmatpush1.msra.mxu0 0.0
        %310 = vmatprep.mubr.f32.mxu0 0.0
        %311 = vmatmul.mubr.f32.gmra.mrb[0].mxu0 %v240
        %v312 = vpop.f32.mrb[0].mxu0
        %v313 = vadd.f32 %v237, %v312
        %v314 = vpop.f32.mrb[0].mxu0
        %315 = vdwg.mxu0
        %vm316 = vcmask 261120
        %317 = vst.msk [vmem:[%s234] sm:$0xff] %vm316, %v313
        %s318 = sand.u32 %s118, 1
        %s319 = scalar_lea.sflag [#allocation4], %s318
        %s320 = sand.u32 %s118, 1
        %s321 = smul.addr %s320, 8
        %s322 = scalar_lea.vmem [#allocation8], %s321
        // Predicated region
        $region45: #{data_embedding_forward.1} parent=31 // pred_check
          %p323 = pneg %p128
        $region46: #{data_embedding_forward.1} parent=31 // pred_check_branch
          %325 = sbr.rel (%p323) target = $region48
        $region47: #{data_embedding_forward.1} parent=31 // pred_region
          %s327 = ssub.s32 128, 128
          %328 = vsyncadd %s319, %s327
          %s329 = sadd.s32 %s25, %s26
          %s330 = smul.addr %s329, 128
          %s331 = scalar_lea.hbm %s3, %s330
          %s333 = sshll.u32 %s322, 4
          %s334 = int_to_ptr.vmem [resolvable:$true] %s333
          %336 = dma.vmem_to_hbm [thread:$0]  %s334, 128, %s331, %s319
        $region48: #{data_embedding_forward.1} parent=31 // pred_fallthru
          _
      $region32: #{data_embedding_forward.1} parent=5 // pred_fallthru
        _
      %p337 = scmp.le.s32.totalorder 2, %s16
      // Predicated region
      $region49: #{data_embedding_forward.1} parent=5 // pred_check
        %p338 = pneg %p337
      $region50: #{data_embedding_forward.1} parent=5 // pred_check_branch
        %340 = sbr.rel (%p338) target = $region52
      $region51: #{data_embedding_forward.1} parent=5 // pred_region
        %s341 = ssub.s32 %s16, 2
        // Predicated region
        $region53: #{data_embedding_forward.1} parent=51 // pred_check
          %p342 = pneg %p134
        $region54: #{data_embedding_forward.1} parent=51 // pred_check_branch
          %344 = sbr.rel (%p342) target = $region56
        $region55: #{data_embedding_forward.1} parent=51 // pred_region
          %s345 = sand.u32 %s119, 1
          %s346 = scalar_lea.sflag [#allocation4], %s345
          %s347 = sand.u32 %s119, 1
          %s348 = smul.addr %s347, 8
          %s349 = scalar_lea.vmem [#allocation8], %s348
          %350 = dma.done %s346, 128
        $region56: #{data_embedding_forward.1} parent=51 // pred_fallthru
          _
      $region52: #{data_embedding_forward.1} parent=5 // pred_fallthru
        _
    $region6: #{data_embedding_forward.1} parent=1 // loop_footer
      %s20 = sadd.s32 1, %s16
    $region7: #{data_embedding_forward.1} parent=1 // loop_footer_branch
      %15 = sbr.rel target = $region3
    $region8: #{data_embedding_forward.1} parent=1 // loop_exit
      _
    %351 = vsyncpa [#allocation3], 1
    %s352 = scalar_lea.sflag [#allocation3], 1
    %353 = vsyncpa %s352, 1
    %354 = vsyncpa [#allocation6], 1
    %355 = vsyncpa [#allocation4], 1
    %s356 = scalar_lea.sflag [#allocation4], 1
    %357 = vsyncpa %s356, 1

</llo_original>
